<compile_context>
chip_gen: v6e
topology: v6e:2x2x1
jax: 0.10.0
libtpu: 0.0.40
codegen_flags: <defaults>
</compile_context>

<pallas_src>
import jax
import jax.numpy as jnp
import numpy as np
from jax.experimental import pallas as pl
from jax.experimental.pallas import tpu as pltpu

# Problem sizes (small, TPU-tile friendly).
B = 8     # batch
D = 128   # latent_dim
H = 128   # hidden
E = 4     # n_experts
K = 2     # top-k


def sparse_moe_kernel(z_ref, wg_ref, bg_ref, w1_ref, b1_ref, w2_ref, b2_ref, out_ref):
    z = z_ref[...]                                                     # (B, D) f32

    # ---- expert first layer: ONE wide (B,D) x (D,E*H) matmul + ReLU --------------
    h_all = jnp.maximum(
        jnp.dot(z, w1_ref[...], preferred_element_type=jnp.float32) + b1_ref[...],
        0.0)                                                           # (B, E*H)

    # ---- gate logits: tiny (B,D) x (D,E) matmul (no zero-padded columns) ---------
    logits = jnp.dot(z, wg_ref[...], preferred_element_type=jnp.float32) + bg_ref[...]

    # ---- softmax over the E gate logits ------------------------------------------
    m = jnp.max(logits, axis=-1, keepdims=True)                        # (B, 1)
    ex = jnp.exp(logits - m)
    denom = jnp.sum(ex, axis=-1, keepdims=True)
    r = pl.reciprocal(denom, approx=True)                              # EUP vrcp (free slot)
    r = r * (2.0 - denom * r)                                          # one Newton step -> ~f32 exact
    w = ex * r                                                         # (B, E) softmax probs

    # ---- top-k on the logits (monotone in softmax), torch.topk lowest-index tie-break
    idx = jax.lax.broadcasted_iota(jnp.int32, logits.shape, 1)         # (B, E)
    gate_sel = jnp.zeros_like(w)
    wk = logits
    cur_max = m                                                        # reuse softmax max (saves 1 XLU pass)
    for t in range(K):                                                 # K=2, unrolled
        first = jnp.min(jnp.where(wk == cur_max, idx, E), axis=-1, keepdims=True)
        hit = idx == first
        gate_sel = jnp.where(hit, w, gate_sel)
        if t + 1 < K:
            wk = jnp.where(hit, -jnp.inf, wk)
            cur_max = jnp.max(wk, axis=-1, keepdims=True)

    # ---- second layer: per-expert partials, gate scaling AFTER the matmul --------
    # acc = sum_e gate_e * (h_e @ w2_e + b2_e)   (bias folded in, no K=4 matmul)
    b2 = b2_ref[...]                                                   # (E, D)
    acc = jnp.zeros((B, D), jnp.float32)
    for e in range(E):                                                 # E=4, unrolled; slices are
        y_e = jnp.dot(h_all[:, e * H:(e + 1) * H],                     # 128-lane / 128-sublane aligned
                      w2_ref[e * H:(e + 1) * H, :],
                      preferred_element_type=jnp.float32) + b2[e]
        acc = acc + gate_sel[:, e:e + 1] * y_e
    out_ref[...] = acc


@jax.jit
def sparse_moe(z, wg, bg, w1_cat, b1_cat, w2_cat, b2_cat):
    vmem = pl.BlockSpec(memory_space=pltpu.MemorySpace.VMEM)
    return pl.pallas_call(
        sparse_moe_kernel,
        out_shape=jax.ShapeDtypeStruct((B, D), jnp.float32),
        in_specs=[vmem] * 7,
        out_specs=vmem,
    )(z, wg, bg, w1_cat, b1_cat, w2_cat, b2_cat)


def fuse_params(w1, b1, w2, b2):
    """Host-side layout prep: stack all expert weights into two wide matrices."""
    w1_cat = jnp.transpose(w1, (1, 0, 2)).reshape(D, E * H)            # [:, e*H:(e+1)*H] = w1[e]
    b1_cat = b1.reshape(1, E * H)
    w2_cat = w2.reshape(E * H, D)                                      # rows e*H:(e+1)*H = w2[e]
    b2_cat = b2.reshape(E, D)
    return w1_cat, b1_cat, w2_cat, b2_cat


def sparse_moe_reference(z, wg, bg, w1, b1, w2, b2):
    """Pure-JAX reference mirroring the PyTorch forward."""
    logits = z @ wg + bg[0]
    w = jax.nn.softmax(logits, axis=-1)
    topw, idx = jax.lax.top_k(w, K)
    mask = jnp.zeros_like(w)
    for j in range(K):
        mask = mask + topw[:, j:j + 1] * jax.nn.one_hot(idx[:, j], E, dtype=w.dtype)
    ys = []
    for e in range(E):
        h = jax.nn.relu(z @ w1[e] + b1[e, 0])
        ys.append(h @ w2[e] + b2[e, 0])
    ys = jnp.stack(ys, axis=1)                                         # (B, E, D)
    return jnp.einsum("be,bed->bd", mask, ys)


if __name__ == "__main__":
    key = jax.random.PRNGKey(0)
    k_z, k_wg, k_bg, k_w1, k_b1, k_w2, k_b2 = jax.random.split(key, 7)

    # Deterministic parameter init (PyTorch-Linear-like uniform scales).
    z  = jax.random.normal(k_z, (B, D), jnp.float32)
    wg = jax.random.uniform(k_wg, (D, E), jnp.float32, -1.0, 1.0) / np.sqrt(D)
    bg = jax.random.uniform(k_bg, (1, E), jnp.float32, -1.0, 1.0) / np.sqrt(D)
    w1 = jax.random.uniform(k_w1, (E, D, H), jnp.float32, -1.0, 1.0) / np.sqrt(D)
    b1 = jax.random.uniform(k_b1, (E, 1, H), jnp.float32, -1.0, 1.0) / np.sqrt(D)
    w2 = jax.random.uniform(k_w2, (E, H, D), jnp.float32, -1.0, 1.0) / np.sqrt(H)
    b2 = jax.random.uniform(k_b2, (E, 1, D), jnp.float32, -1.0, 1.0) / np.sqrt(H)

    # Host-side weight stacking (done once; not part of the kernel).
    w1_cat, b1_cat, w2_cat, b2_cat = jax.tree.map(
        jax.block_until_ready, fuse_params(w1, b1, w2, b2))

    out = sparse_moe(z, wg, bg, w1_cat, b1_cat, w2_cat, b2_cat)
    jax.block_until_ready(out)

    ref = sparse_moe_reference(z, wg, bg, w1, b1, w2, b2)
    np.testing.assert_allclose(np.asarray(out), np.asarray(ref), rtol=1e-4, atol=1e-4)

    print("KERNEL_OK")
</pallas_src>

<mosaic_0001>
module attributes {stable_mosaic.version = 11 : i64} {
  func.func @sparse_moe_kernel(%arg0: memref<8x128xf32, #tpu.memory_space<vmem>>, %arg1: memref<128x4xf32, #tpu.memory_space<vmem>>, %arg2: memref<1x4xf32, #tpu.memory_space<vmem>>, %arg3: memref<128x512xf32, #tpu.memory_space<vmem>>, %arg4: memref<1x512xf32, #tpu.memory_space<vmem>>, %arg5: memref<512x128xf32, #tpu.memory_space<vmem>>, %arg6: memref<4x128xf32, #tpu.memory_space<vmem>>, %arg7: memref<8x128xf32, #tpu.memory_space<vmem>>) attributes {dimension_semantics = [], scalar_prefetch = 0 : i64, scratch_operands = 0 : i64, tpu.core_type = #tpu.core_type<tc>} {
    %c0 = arith.constant 0 : index
    %c0_0 = arith.constant 0 : index
    %0 = vector.load %arg0[%c0, %c0_0] : memref<8x128xf32, #tpu.memory_space<vmem>>, vector<8x128xf32>
    %c0_1 = arith.constant 0 : index
    %c0_2 = arith.constant 0 : index
    %1 = vector.load %arg3[%c0_1, %c0_2] : memref<128x512xf32, #tpu.memory_space<vmem>>, vector<128x512xf32>
    %cst = arith.constant dense<0.000000e+00> : vector<8x512xf32>
    %2 = tpu.matmul %0, %1, %cst {dimension_numbers = #tpu.dot_dimension_numbers<[1], [0], [0], [1], [0, 0, 1, 1], [], []>} : vector<8x128xf32>, vector<128x512xf32>, vector<8x512xf32> -> vector<8x512xf32>
    %c0_3 = arith.constant 0 : index
    %c0_4 = arith.constant 0 : index
    %3 = vector.load %arg4[%c0_3, %c0_4] : memref<1x512xf32, #tpu.memory_space<vmem>>, vector<1x512xf32>
    %4 = vector.broadcast %3 : vector<1x512xf32> to vector<8x512xf32>
    %5 = arith.addf %2, %4 : vector<8x512xf32>
    %cst_5 = arith.constant 0.000000e+00 : f32
    %6 = vector.broadcast %cst_5 : f32 to vector<8x512xf32>
    %7 = arith.maximumf %5, %6 : vector<8x512xf32>
    %c0_6 = arith.constant 0 : index
    %c0_7 = arith.constant 0 : index
    %8 = vector.load %arg1[%c0_6, %c0_7] : memref<128x4xf32, #tpu.memory_space<vmem>>, vector<128x4xf32>
    %cst_8 = arith.constant dense<0.000000e+00> : vector<8x4xf32>
    %9 = tpu.matmul %0, %8, %cst_8 {dimension_numbers = #tpu.dot_dimension_numbers<[1], [0], [0], [1], [0, 0, 1, 1], [], []>} : vector<8x128xf32>, vector<128x4xf32>, vector<8x4xf32> -> vector<8x4xf32>
    %c0_9 = arith.constant 0 : index
    %c0_10 = arith.constant 0 : index
    %10 = vector.load %arg2[%c0_9, %c0_10] : memref<1x4xf32, #tpu.memory_space<vmem>>, vector<1x4xf32>
    %11 = vector.broadcast %10 : vector<1x4xf32> to vector<8x4xf32>
    %12 = arith.addf %9, %11 : vector<8x4xf32>
    %cst_11 = arith.constant dense<0xFF800000> : vector<8xf32>
    %13 = vector.multi_reduction <maximumf>, %12, %cst_11 [1] : vector<8x4xf32> to vector<8xf32>
    %14 = vector.shape_cast %13 : vector<8xf32> to vector<8x1xf32>
    %15 = vector.broadcast %14 : vector<8x1xf32> to vector<8x4xf32>
    %16 = arith.subf %12, %15 : vector<8x4xf32>
    %17 = math.exp %16 : vector<8x4xf32>
    %cst_12 = arith.constant dense<0.000000e+00> : vector<8xf32>
    %18 = vector.multi_reduction <add>, %17, %cst_12 [1] : vector<8x4xf32> to vector<8xf32>
    %19 = vector.shape_cast %18 : vector<8xf32> to vector<8x1xf32>
    %20 = tpu.reciprocal %19 {approx = true} : vector<8x1xf32> -> vector<8x1xf32>
    %21 = arith.mulf %19, %20 : vector<8x1xf32>
    %cst_13 = arith.constant 2.000000e+00 : f32
    %22 = vector.broadcast %cst_13 : f32 to vector<8x1xf32>
    %23 = arith.subf %22, %21 : vector<8x1xf32>
    %24 = arith.mulf %20, %23 : vector<8x1xf32>
    %25 = vector.broadcast %24 : vector<8x1xf32> to vector<8x4xf32>
    %26 = arith.mulf %17, %25 : vector<8x4xf32>
    %27 = tpu.iota {dimensions = array<i32: 1>} : vector<8x4xi32>
    %cst_14 = arith.constant 0.000000e+00 : f32
    %28 = vector.broadcast %cst_14 : f32 to vector<8x4xf32>
    %29 = vector.broadcast %14 : vector<8x1xf32> to vector<8x4xf32>
    %30 = arith.cmpf oeq, %12, %29 : vector<8x4xf32>
    %c4_i32 = arith.constant 4 : i32
    %31 = vector.broadcast %c4_i32 : i32 to vector<8x4xi32>
    %32 = arith.select %30, %27, %31 : vector<8x4xi1>, vector<8x4xi32>
    %cst_15 = arith.constant dense<2147483647> : vector<8xi32>
    %33 = vector.multi_reduction <minsi>, %32, %cst_15 [1] : vector<8x4xi32> to vector<8xi32>
    %34 = vector.shape_cast %33 : vector<8xi32> to vector<8x1xi32>
    %35 = vector.broadcast %34 : vector<8x1xi32> to vector<8x4xi32>
    %36 = arith.cmpi eq, %27, %35 : vector<8x4xi32>
    %37 = arith.select %36, %26, %28 : vector<8x4xi1>, vector<8x4xf32>
    %cst_16 = arith.constant 0xFF800000 : f32
    %38 = vector.broadcast %cst_16 : f32 to vector<8x4xf32>
    %39 = arith.select %36, %38, %12 : vector<8x4xi1>, vector<8x4xf32>
    %cst_17 = arith.constant dense<0xFF800000> : vector<8xf32>
    %40 = vector.multi_reduction <maximumf>, %39, %cst_17 [1] : vector<8x4xf32> to vector<8xf32>
    %41 = vector.shape_cast %40 : vector<8xf32> to vector<8x1xf32>
    %42 = vector.broadcast %41 : vector<8x1xf32> to vector<8x4xf32>
    %43 = arith.cmpf oeq, %39, %42 : vector<8x4xf32>
    %c4_i32_18 = arith.constant 4 : i32
    %44 = vector.broadcast %c4_i32_18 : i32 to vector<8x4xi32>
    %45 = arith.select %43, %27, %44 : vector<8x4xi1>, vector<8x4xi32>
    %cst_19 = arith.constant dense<2147483647> : vector<8xi32>
    %46 = vector.multi_reduction <minsi>, %45, %cst_19 [1] : vector<8x4xi32> to vector<8xi32>
    %47 = vector.shape_cast %46 : vector<8xi32> to vector<8x1xi32>
    %48 = vector.broadcast %47 : vector<8x1xi32> to vector<8x4xi32>
    %49 = arith.cmpi eq, %27, %48 : vector<8x4xi32>
    %50 = arith.select %49, %26, %37 : vector<8x4xi1>, vector<8x4xf32>
    %c0_20 = arith.constant 0 : index
    %c0_21 = arith.constant 0 : index
    %51 = vector.load %arg6[%c0_20, %c0_21] : memref<4x128xf32, #tpu.memory_space<vmem>>, vector<4x128xf32>
    %cst_22 = arith.constant 0.000000e+00 : f32
    %52 = vector.broadcast %cst_22 : f32 to vector<8x128xf32>
    %53 = vector.extract_strided_slice %7 {offsets = [0, 0], sizes = [8, 128], strides = [1, 1]} : vector<8x512xf32> to vector<8x128xf32>
    %c0_23 = arith.constant 0 : index
    %c0_24 = arith.constant 0 : index
    %54 = vector.load %arg5[%c0_23, %c0_24] : memref<512x128xf32, #tpu.memory_space<vmem>>, vector<128x128xf32>
    %cst_25 = arith.constant dense<0.000000e+00> : vector<8x128xf32>
    %55 = tpu.matmul %53, %54, %cst_25 {dimension_numbers = #tpu.dot_dimension_numbers<[1], [0], [0], [1], [0, 0, 1, 1], [], []>} : vector<8x128xf32>, vector<128x128xf32>, vector<8x128xf32> -> vector<8x128xf32>
    %56 = vector.extract_strided_slice %51 {offsets = [0, 0], sizes = [1, 128], strides = [1, 1]} : vector<4x128xf32> to vector<1x128xf32>
    %57 = vector.shape_cast %56 : vector<1x128xf32> to vector<128xf32>
    %58 = vector.shape_cast %57 : vector<128xf32> to vector<1x128xf32>
    %59 = vector.broadcast %58 : vector<1x128xf32> to vector<8x128xf32>
    %60 = arith.addf %55, %59 : vector<8x128xf32>
    %61 = vector.extract_strided_slice %50 {offsets = [0, 0], sizes = [8, 1], strides = [1, 1]} : vector<8x4xf32> to vector<8x1xf32>
    %62 = vector.broadcast %61 : vector<8x1xf32> to vector<8x128xf32>
    %63 = arith.mulf %62, %60 : vector<8x128xf32>
    %64 = arith.addf %52, %63 : vector<8x128xf32>
    %65 = vector.extract_strided_slice %7 {offsets = [0, 128], sizes = [8, 128], strides = [1, 1]} : vector<8x512xf32> to vector<8x128xf32>
    %c128 = arith.constant 128 : index
    %c0_26 = arith.constant 0 : index
    %66 = vector.load %arg5[%c128, %c0_26] : memref<512x128xf32, #tpu.memory_space<vmem>>, vector<128x128xf32>
    %cst_27 = arith.constant dense<0.000000e+00> : vector<8x128xf32>
    %67 = tpu.matmul %65, %66, %cst_27 {dimension_numbers = #tpu.dot_dimension_numbers<[1], [0], [0], [1], [0, 0, 1, 1], [], []>} : vector<8x128xf32>, vector<128x128xf32>, vector<8x128xf32> -> vector<8x128xf32>
    %68 = vector.extract_strided_slice %51 {offsets = [1, 0], sizes = [1, 128], strides = [1, 1]} : vector<4x128xf32> to vector<1x128xf32>
    %69 = vector.shape_cast %68 : vector<1x128xf32> to vector<128xf32>
    %70 = vector.shape_cast %69 : vector<128xf32> to vector<1x128xf32>
    %71 = vector.broadcast %70 : vector<1x128xf32> to vector<8x128xf32>
    %72 = arith.addf %67, %71 : vector<8x128xf32>
    %73 = vector.extract_strided_slice %50 {offsets = [0, 1], sizes = [8, 1], strides = [1, 1]} : vector<8x4xf32> to vector<8x1xf32>
    %74 = vector.broadcast %73 : vector<8x1xf32> to vector<8x128xf32>
    %75 = arith.mulf %74, %72 : vector<8x128xf32>
    %76 = arith.addf %64, %75 : vector<8x128xf32>
    %77 = vector.extract_strided_slice %7 {offsets = [0, 256], sizes = [8, 128], strides = [1, 1]} : vector<8x512xf32> to vector<8x128xf32>
    %c256 = arith.constant 256 : index
    %c0_28 = arith.constant 0 : index
    %78 = vector.load %arg5[%c256, %c0_28] : memref<512x128xf32, #tpu.memory_space<vmem>>, vector<128x128xf32>
    %cst_29 = arith.constant dense<0.000000e+00> : vector<8x128xf32>
    %79 = tpu.matmul %77, %78, %cst_29 {dimension_numbers = #tpu.dot_dimension_numbers<[1], [0], [0], [1], [0, 0, 1, 1], [], []>} : vector<8x128xf32>, vector<128x128xf32>, vector<8x128xf32> -> vector<8x128xf32>
    %80 = vector.extract_strided_slice %51 {offsets = [2, 0], sizes = [1, 128], strides = [1, 1]} : vector<4x128xf32> to vector<1x128xf32>
    %81 = vector.shape_cast %80 : vector<1x128xf32> to vector<128xf32>
    %82 = vector.shape_cast %81 : vector<128xf32> to vector<1x128xf32>
    %83 = vector.broadcast %82 : vector<1x128xf32> to vector<8x128xf32>
    %84 = arith.addf %79, %83 : vector<8x128xf32>
    %85 = vector.extract_strided_slice %50 {offsets = [0, 2], sizes = [8, 1], strides = [1, 1]} : vector<8x4xf32> to vector<8x1xf32>
    %86 = vector.broadcast %85 : vector<8x1xf32> to vector<8x128xf32>
    %87 = arith.mulf %86, %84 : vector<8x128xf32>
    %88 = arith.addf %76, %87 : vector<8x128xf32>
    %89 = vector.extract_strided_slice %7 {offsets = [0, 384], sizes = [8, 128], strides = [1, 1]} : vector<8x512xf32> to vector<8x128xf32>
    %c384 = arith.constant 384 : index
    %c0_30 = arith.constant 0 : index
    %90 = vector.load %arg5[%c384, %c0_30] : memref<512x128xf32, #tpu.memory_space<vmem>>, vector<128x128xf32>
    %cst_31 = arith.constant dense<0.000000e+00> : vector<8x128xf32>
    %91 = tpu.matmul %89, %90, %cst_31 {dimension_numbers = #tpu.dot_dimension_numbers<[1], [0], [0], [1], [0, 0, 1, 1], [], []>} : vector<8x128xf32>, vector<128x128xf32>, vector<8x128xf32> -> vector<8x128xf32>
    %92 = vector.extract_strided_slice %51 {offsets = [3, 0], sizes = [1, 128], strides = [1, 1]} : vector<4x128xf32> to vector<1x128xf32>
    %93 = vector.shape_cast %92 : vector<1x128xf32> to vector<128xf32>
    %94 = vector.shape_cast %93 : vector<128xf32> to vector<1x128xf32>
    %95 = vector.broadcast %94 : vector<1x128xf32> to vector<8x128xf32>
    %96 = arith.addf %91, %95 : vector<8x128xf32>
    %97 = vector.extract_strided_slice %50 {offsets = [0, 3], sizes = [8, 1], strides = [1, 1]} : vector<8x4xf32> to vector<8x1xf32>
    %98 = vector.broadcast %97 : vector<8x1xf32> to vector<8x128xf32>
    %99 = arith.mulf %98, %96 : vector<8x128xf32>
    %100 = arith.addf %88, %99 : vector<8x128xf32>
    %c0_32 = arith.constant 0 : index
    %c0_33 = arith.constant 0 : index
    %101 = vector.load %arg7[%c0_32, %c0_33] : memref<8x128xf32, #tpu.memory_space<vmem>>, vector<8x128xf32>
    tpu.vector_store %arg7[%c0_32, %c0_33], %100 {strides = array<i32>} : memref<8x128xf32, #tpu.memory_space<vmem>>, vector<8x128xf32>,
    return
  }
}

</mosaic_0001>

<llo_original>
// kernel: sparse_moe.1
$region0: #{sparse_moe.1}
  #allocation0 [shape = 'u32[]', space=smem, size = 0x4, offset = 0x4, fixed_abs, tag = 'smem constant byte address 0x4 - core index']
  #allocation1 [shape = 'u32[144,128]{1,0:T(1,128)}', space=vmem, size = 0x12000, scoped, tag = 'internal scratch']
  %s0 = inlined_call_operand.vmem [shape: f32[8,128], index: 0, kind: input, shape index: {}]
  %s1 = inlined_call_operand.vmem [shape: f32[128,4], index: 1, kind: input, shape index: {}]
  %s2 = inlined_call_operand.vmem [shape: f32[1,4], index: 2, kind: input, shape index: {}]
  %s3 = inlined_call_operand.hbm [shape: f32[128,512], index: 3, kind: input, shape index: {}]
  %s4 = inlined_call_operand.vmem [shape: f32[1,512], index: 4, kind: input, shape index: {}]
  %s5 = inlined_call_operand.hbm [shape: f32[512,128], index: 5, kind: input, shape index: {}]
  %s6 = inlined_call_operand.vmem [shape: f32[4,128], index: 6, kind: input, shape index: {}]
  %s7 = inlined_call_operand.hbm [shape: f32[8,128], index: 7, kind: output, shape index: {}]
  %s8 = sld [smem:[#allocation0]]
  $region46: #{sparse_moe.1} parent=0
    _
  %s10 = ssub.s32 1, %s8
  %s11 = scalar_select 0, %s10, %s8
  $region1: #{sparse_moe.1} parent=0
    #allocation2 [shape = 'u8[262144]{0}', space=vmem, size = 0x40000, scoped, tag = 'input window, operand 3, single buffered']
    #allocation3 [shape = 's32[1]{0}', space=sflag, size = 0x4, scoped, tag = 'scoped memory for sparse_moe.1']
    #allocation4 [shape = 's32[1]{0}', space=sflag, size = 0x4, scoped, tag = 'scoped memory for sparse_moe.1']
    #allocation5 [shape = 'u8[262144]{0}', space=vmem, size = 0x40000, scoped, tag = 'input window, operand 5, single buffered']
    #allocation6 [shape = 's32[1]{0}', space=sflag, size = 0x4, scoped, tag = 'scoped memory for sparse_moe.1']
    #allocation7 [shape = 'u8[4096]{0}', space=vmem, size = 0x1000, scoped, tag = 'output window, operand 0, single buffered']
    %12 = vsyncpa [#allocation3], 0
    %13 = vsyncpa [#allocation6], 0
    %14 = vsyncpa [#allocation4], 0
    // Predicated region
    $region2: #{sparse_moe.1} parent=1 // pred_check
      _
    $region3: #{sparse_moe.1} parent=1 // pred_check_branch
      %16 = sbr.rel (0) target = $region5
    $region4: #{sparse_moe.1} parent=1 // pred_region
      _
    $region5: #{sparse_moe.1} parent=1 // pred_fallthru
      _
    // Predicated region
    $region6: #{sparse_moe.1} parent=1 // pred_check
      _
    $region7: #{sparse_moe.1} parent=1 // pred_check_branch
      %18 = sbr.rel (0) target = $region9
    $region8: #{sparse_moe.1} parent=1 // pred_region
      _
    $region9: #{sparse_moe.1} parent=1 // pred_fallthru
      _
    // Predicated region
    $region10: #{sparse_moe.1} parent=1 // pred_check
      _
    $region11: #{sparse_moe.1} parent=1 // pred_check_branch
      %20 = sbr.rel (0) target = $region13
    $region12: #{sparse_moe.1} parent=1 // pred_region
      _
    $region13: #{sparse_moe.1} parent=1 // pred_fallthru
      _
    // Predicated region
    $region14: #{sparse_moe.1} parent=1 // pred_check
      _
    $region15: #{sparse_moe.1} parent=1 // pred_check_branch
      %22 = sbr.rel (0) target = $region17
    $region16: #{sparse_moe.1} parent=1 // pred_region
      %s24 = ssub.s32 8192, 8192
      %25 = vsyncadd [#allocation3], %s24
      %s26 = sshll.u32 [#allocation2], 4
      %s27 = int_to_ptr.vmem [resolvable:$true] %s26
      %32 = dma.hbm_to_vmem [thread:$0]  %s3, 8192, %s27, [#allocation3], 512, 512, 32
    $region17: #{sparse_moe.1} parent=1 // pred_fallthru
      _
    // Predicated region
    $region18: #{sparse_moe.1} parent=1 // pred_check
      _
    $region19: #{sparse_moe.1} parent=1 // pred_check_branch
      %34 = sbr.rel (0) target = $region21
    $region20: #{sparse_moe.1} parent=1 // pred_region
      _
    $region21: #{sparse_moe.1} parent=1 // pred_fallthru
      _
    // Predicated region
    $region22: #{sparse_moe.1} parent=1 // pred_check
      _
    $region23: #{sparse_moe.1} parent=1 // pred_check_branch
      %36 = sbr.rel (0) target = $region25
    $region24: #{sparse_moe.1} parent=1 // pred_region
      %s38 = ssub.s32 8192, 8192
      %39 = vsyncadd [#allocation6], %s38
      %s40 = sshll.u32 [#allocation5], 4
      %s41 = int_to_ptr.vmem [resolvable:$true] %s40
      %46 = dma.hbm_to_vmem [thread:$0]  %s5, 8192, %s41, [#allocation6], 128, 128, 8
    $region25: #{sparse_moe.1} parent=1 // pred_fallthru
      _
    // Predicated region
    $region26: #{sparse_moe.1} parent=1 // pred_check
      _
    $region27: #{sparse_moe.1} parent=1 // pred_check_branch
      %48 = sbr.rel (0) target = $region29
    $region28: #{sparse_moe.1} parent=1 // pred_region
      _
    $region29: #{sparse_moe.1} parent=1 // pred_fallthru
      _
    // Predicated region
    $region30: #{sparse_moe.1} parent=1 // pred_check
      _
    $region31: #{sparse_moe.1} parent=1 // pred_check_branch
      %50 = sbr.rel (0) target = $region33
    $region32: #{sparse_moe.1} parent=1 // pred_region
      %51 = dma.done [#allocation3], 8192
    $region33: #{sparse_moe.1} parent=1 // pred_fallthru
      _
    // Predicated region
    $region34: #{sparse_moe.1} parent=1 // pred_check
      _
    $region35: #{sparse_moe.1} parent=1 // pred_check_branch
      %53 = sbr.rel (0) target = $region37
    $region36: #{sparse_moe.1} parent=1 // pred_region
      %54 = dma.done [#allocation6], 8192
    $region37: #{sparse_moe.1} parent=1 // pred_fallthru
      _
    %v55 = vld [vmem:[%s0] sm:$0xff]
    %v56 = vld [vmem:[#allocation2] sm:$0xff]
    %v57 = vld [vmem:[#allocation2 + $0x8] sm:$0xff]
    %v58 = vld [vmem:[#allocation2 + $0x10] sm:$0xff]
    %v59 = vld [vmem:[#allocation2 + $0x18] sm:$0xff]
    %v60 = vld [vmem:[#allocation2 + $0x20] sm:$0xff]
    %v61 = vld [vmem:[#allocation2 + $0x28] sm:$0xff]
    %v62 = vld [vmem:[#allocation2 + $0x30] sm:$0xff]
    %v63 = vld [vmem:[#allocation2 + $0x38] sm:$0xff]
    %v64 = vld [vmem:[#allocation2 + $0x40] sm:$0xff]
    %v65 = vld [vmem:[#allocation2 + $0x48] sm:$0xff]
    %v66 = vld [vmem:[#allocation2 + $0x50] sm:$0xff]
    %v67 = vld [vmem:[#allocation2 + $0x58] sm:$0xff]
    %v68 = vld [vmem:[#allocation2 + $0x60] sm:$0xff]
    %v69 = vld [vmem:[#allocation2 + $0x68] sm:$0xff]
    %v70 = vld [vmem:[#allocation2 + $0x70] sm:$0xff]
    %v71 = vld [vmem:[#allocation2 + $0x78] sm:$0xff]
    %v72 = vld [vmem:[#allocation2 + $0x80] sm:$0xff]
    %v73 = vld [vmem:[#allocation2 + $0x88] sm:$0xff]
    %v74 = vld [vmem:[#allocation2 + $0x90] sm:$0xff]
    %v75 = vld [vmem:[#allocation2 + $0x98] sm:$0xff]
    %v76 = vld [vmem:[#allocation2 + $0xa0] sm:$0xff]
    %v77 = vld [vmem:[#allocation2 + $0xa8] sm:$0xff]
    %v78 = vld [vmem:[#allocation2 + $0xb0] sm:$0xff]
    %v79 = vld [vmem:[#allocation2 + $0xb8] sm:$0xff]
    %v80 = vld [vmem:[#allocation2 + $0xc0] sm:$0xff]
    %v81 = vld [vmem:[#allocation2 + $0xc8] sm:$0xff]
    %v82 = vld [vmem:[#allocation2 + $0xd0] sm:$0xff]
    %v83 = vld [vmem:[#allocation2 + $0xd8] sm:$0xff]
    %v84 = vld [vmem:[#allocation2 + $0xe0] sm:$0xff]
    %v85 = vld [vmem:[#allocation2 + $0xe8] sm:$0xff]
    %v86 = vld [vmem:[#allocation2 + $0xf0] sm:$0xff]
    %v87 = vld [vmem:[#allocation2 + $0xf8] sm:$0xff]
    %v88 = vld [vmem:[#allocation2 + $0x100] sm:$0xff]
    %v89 = vld [vmem:[#allocation2 + $0x108] sm:$0xff]
    %v90 = vld [vmem:[#allocation2 + $0x110] sm:$0xff]
    %v91 = vld [vmem:[#allocation2 + $0x118] sm:$0xff]
    %v92 = vld [vmem:[#allocation2 + $0x120] sm:$0xff]
    %v93 = vld [vmem:[#allocation2 + $0x128] sm:$0xff]
    %v94 = vld [vmem:[#allocation2 + $0x130] sm:$0xff]
    %v95 = vld [vmem:[#allocation2 + $0x138] sm:$0xff]
    %v96 = vld [vmem:[#allocation2 + $0x140] sm:$0xff]
    %v97 = vld [vmem:[#allocation2 + $0x148] sm:$0xff]
    %v98 = vld [vmem:[#allocation2 + $0x150] sm:$0xff]
    %v99 = vld [vmem:[#allocation2 + $0x158] sm:$0xff]
    %v100 = vld [vmem:[#allocation2 + $0x160] sm:$0xff]
    %v101 = vld [vmem:[#allocation2 + $0x168] sm:$0xff]
    %v102 = vld [vmem:[#allocation2 + $0x170] sm:$0xff]
    %v103 = vld [vmem:[#allocation2 + $0x178] sm:$0xff]
    %v104 = vld [vmem:[#allocation2 + $0x180] sm:$0xff]
    %v105 = vld [vmem:[#allocation2 + $0x188] sm:$0xff]
    %v106 = vld [vmem:[#allocation2 + $0x190] sm:$0xff]
    %v107 = vld [vmem:[#allocation2 + $0x198] sm:$0xff]
    %v108 = vld [vmem:[#allocation2 + $0x1a0] sm:$0xff]
    %v109 = vld [vmem:[#allocation2 + $0x1a8] sm:$0xff]
    %v110 = vld [vmem:[#allocation2 + $0x1b0] sm:$0xff]
    %v111 = vld [vmem:[#allocation2 + $0x1b8] sm:$0xff]
    %v112 = vld [vmem:[#allocation2 + $0x1c0] sm:$0xff]
    %v113 = vld [vmem:[#allocation2 + $0x1c8] sm:$0xff]
    %v114 = vld [vmem:[#allocation2 + $0x1d0] sm:$0xff]
    %v115 = vld [vmem:[#allocation2 + $0x1d8] sm:$0xff]
    %v116 = vld [vmem:[#allocation2 + $0x1e0] sm:$0xff]
    %v117 = vld [vmem:[#allocation2 + $0x1e8] sm:$0xff]
    %v118 = vld [vmem:[#allocation2 + $0x1f0] sm:$0xff]
    %v119 = vld [vmem:[#allocation2 + $0x1f8] sm:$0xff]
    %v120 = vld [vmem:[%s4] sm:$0xf]
    %v122 = vlaneseq
    %v123 = vshrl.u32 %v122, 7
    %v124 = vsub.s32 0, %v123
    %v125 = vrot.slane %v120, %v124
    %v126 = vlaneseq
    %v127 = vshrl.u32 %v126, 7
    %v128 = vsub.s32 1, %v127
    %v129 = vrot.slane %v120, %v128
    %v130 = vlaneseq
    %v131 = vshrl.u32 %v130, 7
    %v132 = vsub.s32 2, %v131
    %v133 = vrot.slane %v120, %v132
    %v134 = vlaneseq
    %v135 = vshrl.u32 %v134, 7
    %v136 = vsub.s32 3, %v135
    %v137 = vrot.slane %v120, %v136
    %142 = vmatprep.subr.mxu0 %v117
    %143 = vmatpush1.msra.mxu0 %v116
    %144 = vmatprep.subr.mxu0 %v113
    %145 = vmatpush1.msra.mxu0 %v112
    %146 = vmatprep.subr.mxu0 %v109
    %147 = vmatpush1.msra.mxu0 %v108
    %148 = vmatprep.subr.mxu0 %v105
    %149 = vmatpush1.msra.mxu0 %v104
    %150 = vmatprep.subr.mxu0 %v101
    %151 = vmatpush1.msra.mxu0 %v100
    %152 = vmatprep.subr.mxu0 %v97
    %153 = vmatpush1.msra.mxu0 %v96
    %154 = vmatprep.subr.mxu0 %v93
    %155 = vmatpush1.msra.mxu0 %v92
    %156 = vmatprep.subr.mxu0 %v89
    %157 = vmatpush1.msra.mxu0 %v88
    %158 = vmatprep.subr.mxu0 %v85
    %159 = vmatpush1.msra.mxu0 %v84
    %160 = vmatprep.subr.mxu0 %v81
    %161 = vmatpush1.msra.mxu0 %v80
    %162 = vmatprep.subr.mxu0 %v77
    %163 = vmatpush1.msra.mxu0 %v76
    %164 = vmatprep.subr.mxu0 %v73
    %165 = vmatpush1.msra.mxu0 %v72
    %166 = vmatprep.subr.mxu0 %v69
    %167 = vmatpush1.msra.mxu0 %v68
    %168 = vmatprep.subr.mxu0 %v65
    %169 = vmatpush1.msra.mxu0 %v64
    %170 = vmatprep.subr.mxu0 %v61
    %171 = vmatpush1.msra.mxu0 %v60
    %172 = vmatprep.subr.mxu0 %v57
    %173 = vmatpush1.msra.mxu0 %v56
    %174 = vmatprep.subr.mxu0 0.0
    %175 = vmatpush2.msra.mxu0 0.0
    %176 = vmatprep.subr.mxu0 0.0
    %177 = vmatpush2.msra.mxu0 0.0
    %178 = vmatprep.subr.mxu0 0.0
    %179 = vmatpush2.msra.mxu0 0.0
    %180 = vmatprep.subr.mxu0 0.0
    %181 = vmatpush2.msra.mxu0 0.0
    %182 = vmatprep.subr.mxu0 0.0
    %183 = vmatpush2.msra.mxu0 0.0
    %184 = vmatprep.subr.mxu0 0.0
    %185 = vmatpush2.msra.mxu0 0.0
    %186 = vmatprep.subr.mxu0 0.0
    %187 = vmatpush2.msra.mxu0 0.0
    %188 = vmatprep.subr.mxu0 0.0
    %189 = vmatpush2.msra.mxu0 0.0
    %190 = vmatprep.subr.mxu0 0.0
    %191 = vmatpush2.msra.mxu0 0.0
    %192 = vmatprep.subr.mxu0 0.0
    %193 = vmatpush2.msra.mxu0 0.0
    %194 = vmatprep.subr.mxu0 0.0
    %195 = vmatpush2.msra.mxu0 0.0
    %196 = vmatprep.subr.mxu0 0.0
    %197 = vmatpush2.msra.mxu0 0.0
    %198 = vmatprep.subr.mxu0 0.0
    %199 = vmatpush2.msra.mxu0 0.0
    %200 = vmatprep.subr.mxu0 0.0
    %201 = vmatpush2.msra.mxu0 0.0
    %202 = vmatprep.subr.mxu0 0.0
    %203 = vmatpush2.msra.mxu0 0.0
    %204 = vmatprep.subr.mxu0 0.0
    %205 = vmatpush2.msra.mxu0 0.0
    %206 = vmatprep.mubr.f32.mxu0 0.0
    %207 = vmatmul.mubr.f32.gmra.mxu0 %v55
    %v208 = vpop.f32.mrf.mxu0
    %v209 = vadd.f32 %v125, %v208
    %v210 = vpop.f32.mrf.mxu0
    %v211 = vadd.f32 %v129, %v210
    %212 = vdwg.mxu0
    %213 = vmatprep.subr.mxu0 %v119
    %214 = vmatpush1.msra.mxu0 %v118
    %215 = vmatprep.subr.mxu0 %v115
    %216 = vmatpush1.msra.mxu0 %v114
    %217 = vmatprep.subr.mxu0 %v111
    %218 = vmatpush1.msra.mxu0 %v110
    %219 = vmatprep.subr.mxu0 %v107
    %220 = vmatpush1.msra.mxu0 %v106
    %221 = vmatprep.subr.mxu0 %v103
    %222 = vmatpush1.msra.mxu0 %v102
    %223 = vmatprep.subr.mxu0 %v99
    %224 = vmatpush1.msra.mxu0 %v98
    %225 = vmatprep.subr.mxu0 %v95
    %226 = vmatpush1.msra.mxu0 %v94
    %227 = vmatprep.subr.mxu0 %v91
    %228 = vmatpush1.msra.mxu0 %v90
    %229 = vmatprep.subr.mxu0 %v87
    %230 = vmatpush1.msra.mxu0 %v86
    %231 = vmatprep.subr.mxu0 %v83
    %232 = vmatpush1.msra.mxu0 %v82
    %233 = vmatprep.subr.mxu0 %v79
    %234 = vmatpush1.msra.mxu0 %v78
    %235 = vmatprep.subr.mxu0 %v75
    %236 = vmatpush1.msra.mxu0 %v74
    %237 = vmatprep.subr.mxu0 %v71
    %238 = vmatpush1.msra.mxu0 %v70
    %239 = vmatprep.subr.mxu0 %v67
    %240 = vmatpush1.msra.mxu0 %v66
    %241 = vmatprep.subr.mxu0 %v63
    %242 = vmatpush1.msra.mxu0 %v62
    %243 = vmatprep.subr.mxu0 %v59
    %244 = vmatpush1.msra.mxu0 %v58
    %245 = vmatprep.subr.mxu0 0.0
    %246 = vmatpush2.msra.mxu0 0.0
    %247 = vmatprep.subr.mxu0 0.0
    %248 = vmatpush2.msra.mxu0 0.0
    %249 = vmatprep.subr.mxu0 0.0
    %250 = vmatpush2.msra.mxu0 0.0
    %251 = vmatprep.subr.mxu0 0.0
    %252 = vmatpush2.msra.mxu0 0.0
    %253 = vmatprep.subr.mxu0 0.0
    %254 = vmatpush2.msra.mxu0 0.0
    %255 = vmatprep.subr.mxu0 0.0
    %256 = vmatpush2.msra.mxu0 0.0
    %257 = vmatprep.subr.mxu0 0.0
    %258 = vmatpush2.msra.mxu0 0.0
    %259 = vmatprep.subr.mxu0 0.0
    %260 = vmatpush2.msra.mxu0 0.0
    %261 = vmatprep.subr.mxu0 0.0
    %262 = vmatpush2.msra.mxu0 0.0
    %263 = vmatprep.subr.mxu0 0.0
    %264 = vmatpush2.msra.mxu0 0.0
    %265 = vmatprep.subr.mxu0 0.0
    %266 = vmatpush2.msra.mxu0 0.0
    %267 = vmatprep.subr.mxu0 0.0
    %268 = vmatpush2.msra.mxu0 0.0
    %269 = vmatprep.subr.mxu0 0.0
    %270 = vmatpush2.msra.mxu0 0.0
    %271 = vmatprep.subr.mxu0 0.0
    %272 = vmatpush2.msra.mxu0 0.0
    %273 = vmatprep.subr.mxu0 0.0
    %274 = vmatpush2.msra.mxu0 0.0
    %275 = vmatprep.subr.mxu0 0.0
    %276 = vmatpush2.msra.mxu0 0.0
    %277 = vmatprep.mubr.f32.mxu0 0.0
    %278 = vmatmul.mubr.f32.gmra.mxu0 %v55
    %v279 = vpop.f32.mrf.mxu0
    %v280 = vadd.f32 %v133, %v279
    %v281 = vpop.f32.mrf.mxu0
    %v282 = vadd.f32 %v137, %v281
    %283 = vdwg.mxu0
    %v284 = vmax.f32 %v209, 0.0
    %v285 = vmax.f32 %v211, 0.0
    %v286 = vmax.f32 %v280, 0.0
    %v287 = vmax.f32 %v282, 0.0
    %v288 = vld [vmem:[%s1] sm:$0xff]
    %v289 = vld [vmem:[%s1 + $0x8] sm:$0xff]
    %v290 = vld [vmem:[%s1 + $0x10] sm:$0xff]
    %v291 = vld [vmem:[%s1 + $0x18] sm:$0xff]
    %v292 = vld [vmem:[%s1 + $0x20] sm:$0xff]
    %v293 = vld [vmem:[%s1 + $0x28] sm:$0xff]
    %v294 = vld [vmem:[%s1 + $0x30] sm:$0xff]
    %v295 = vld [vmem:[%s1 + $0x38] sm:$0xff]
    %v296 = vld [vmem:[%s1 + $0x40] sm:$0xff]
    %v297 = vld [vmem:[%s1 + $0x48] sm:$0xff]
    %v298 = vld [vmem:[%s1 + $0x50] sm:$0xff]
    %v299 = vld [vmem:[%s1 + $0x58] sm:$0xff]
    %v300 = vld [vmem:[%s1 + $0x60] sm:$0xff]
    %v301 = vld [vmem:[%s1 + $0x68] sm:$0xff]
    %v302 = vld [vmem:[%s1 + $0x70] sm:$0xff]
    %v303 = vld [vmem:[%s1 + $0x78] sm:$0xff]
    %v304 = vld [vmem:[%s2] sm:$0x1]
    %v306 = vlaneseq
    %v307 = vshrl.u32 %v306, 7
    %v308 = vsub.s32 0, %v307
    %v309 = vrot.slane %v304, %v308
    %311 = vmatprep.subr.mxu0 0.0
    %312 = vmatpush1.msra.mxu0 %v303
    %313 = vmatprep.subr.mxu0 0.0
    %314 = vmatpush1.msra.mxu0 %v302
    %315 = vmatprep.subr.mxu0 0.0
    %316 = vmatpush1.msra.mxu0 %v301
    %317 = vmatprep.subr.mxu0 0.0
    %318 = vmatpush1.msra.mxu0 %v300
    %319 = vmatprep.subr.mxu0 0.0
    %320 = vmatpush1.msra.mxu0 %v299
    %321 = vmatprep.subr.mxu0 0.0
    %322 = vmatpush1.msra.mxu0 %v298
    %323 = vmatprep.subr.mxu0 0.0
    %324 = vmatpush1.msra.mxu0 %v297
    %325 = vmatprep.subr.mxu0 0.0
    %326 = vmatpush1.msra.mxu0 %v296
    %327 = vmatprep.subr.mxu0 0.0
    %328 = vmatpush1.msra.mxu0 %v295
    %329 = vmatprep.subr.mxu0 0.0
    %330 = vmatpush1.msra.mxu0 %v294
    %331 = vmatprep.subr.mxu0 0.0
    %332 = vmatpush1.msra.mxu0 %v293
    %333 = vmatprep.subr.mxu0 0.0
    %334 = vmatpush1.msra.mxu0 %v292
    %335 = vmatprep.subr.mxu0 0.0
    %336 = vmatpush1.msra.mxu0 %v291
    %337 = vmatprep.subr.mxu0 0.0
    %338 = vmatpush1.msra.mxu0 %v290
    %339 = vmatprep.subr.mxu0 0.0
    %340 = vmatpush1.msra.mxu0 %v289
    %341 = vmatprep.subr.mxu0 0.0
    %342 = vmatpush1.msra.mxu0 %v288
    %343 = vmatprep.subr.mxu0 0.0
    %344 = vmatpush2.msra.mxu0 0.0
    %345 = vmatprep.subr.mxu0 0.0
    %346 = vmatpush2.msra.mxu0 0.0
    %347 = vmatprep.subr.mxu0 0.0
    %348 = vmatpush2.msra.mxu0 0.0
    %349 = vmatprep.subr.mxu0 0.0
    %350 = vmatpush2.msra.mxu0 0.0
    %351 = vmatprep.subr.mxu0 0.0
    %352 = vmatpush2.msra.mxu0 0.0
    %353 = vmatprep.subr.mxu0 0.0
    %354 = vmatpush2.msra.mxu0 0.0
    %355 = vmatprep.subr.mxu0 0.0
    %356 = vmatpush2.msra.mxu0 0.0
    %357 = vmatprep.subr.mxu0 0.0
    %358 = vmatpush2.msra.mxu0 0.0
    %359 = vmatprep.subr.mxu0 0.0
    %360 = vmatpush2.msra.mxu0 0.0
    %361 = vmatprep.subr.mxu0 0.0
    %362 = vmatpush2.msra.mxu0 0.0
    %363 = vmatprep.subr.mxu0 0.0
    %364 = vmatpush2.msra.mxu0 0.0
    %365 = vmatprep.subr.mxu0 0.0
    %366 = vmatpush2.msra.mxu0 0.0
    %367 = vmatprep.subr.mxu0 0.0
    %368 = vmatpush2.msra.mxu0 0.0
    %369 = vmatprep.subr.mxu0 0.0
    %370 = vmatpush2.msra.mxu0 0.0
    %371 = vmatprep.subr.mxu0 0.0
    %372 = vmatpush2.msra.mxu0 0.0
    %373 = vmatprep.subr.mxu0 0.0
    %374 = vmatpush2.msra.mxu0 0.0
    %375 = vmatprep.mubr.f32.mxu0 0.0
    %376 = vmatmul.mubr.f32.gmra.mxu0 %v55
    %v377 = vpop.f32.mrf.mxu0
    %v378 = vadd.f32 %v309, %v377
    %v379 = vpop.f32.mrf.mxu0
    %380 = vdwg.mxu0
    %vm381 = vcmask 31744
    %v382 = vsel %vm381, %v378, -inf
    %383 = vmax.xlane.f32.xlu0 %v382
    %v384 = vpop.xlane.xlu0 %383
    %v385 = vsub.f32 %v378, %v384
    %v386 = vmul.f32 %v385, 1.442695
    %v387 = vpow.pop %v386
    %v388 = vsel %vm381, %v387, 0.0
    %389 = vadd.xlane.f32.xlu0 %v388
    %v390 = vpop.xlane.xlu0 %389
    %v391 = vrcp.pop %v390
    %v392 = vmul.f32 %v390, %v391
    %v393 = vsub.f32 2.0, %v392
    %v394 = vmul.f32 %v391, %v393
    %v395 = vmul.f32 %v387, %v394
    %v396 = vlaneseq
    %v397 = vand.u32 %v396, 127
    %vm398 = vcmp.eq.f32.partialorder %v378, %v384
    %v399 = vsel %vm398, %v397, 4
    %v400 = vsel %vm381, %v399, 2147483647
    %v401 = vand.u32 %v400, 65535
    %v402 = vshra.s32 %v400, 16
    %v403 = vcvt.s32.f32 %v401
    %v404 = vcvt.s32.f32 %v402
    %405 = vmin.xlane.f32.xlu0 %v404
    %v406 = vpop.xlane.xlu0 %405
    %vm407 = vcmp.eq.f32.partialorder %v404, %v406
    %v408 = vsel %vm407, %v403, inf
    %409 = vmin.xlane.f32.xlu0 %v408
    %v410 = vpop.xlane.xlu0 %409
    %v411 = vcvt.f32.s32 %v410
    %v412 = vcvt.f32.s32 %v406
    %v413 = vshll.u32 %v412, 16
    %v414 = vadd.s32 %v413, %v411
    %vm415 = vcmp.eq.s32.totalorder %v397, %v414
    %v416 = vsel %vm415, %v395, 0.0
    %v417 = vsel %vm415, -inf, %v378
    %v418 = vsel %vm381, %v417, -inf
    %419 = vmax.xlane.f32.xlu0 %v418
    %v420 = vpop.xlane.xlu0 %419
    %vm421 = vcmp.eq.f32.partialorder %v417, %v420
    %v422 = vsel %vm421, %v397, 4
    %v423 = vsel %vm381, %v422, 2147483647
    %v424 = vand.u32 %v423, 65535
    %v425 = vshra.s32 %v423, 16
    %v426 = vcvt.s32.f32 %v424
    %v427 = vcvt.s32.f32 %v425
    %428 = vmin.xlane.f32.xlu0 %v427
    %v429 = vpop.xlane.xlu0 %428
    %vm430 = vcmp.eq.f32.partialorder %v427, %v429
    %v431 = vsel %vm430, %v426, inf
    %432 = vmin.xlane.f32.xlu0 %v431
    %v433 = vpop.xlane.xlu0 %432
    %v434 = vcvt.f32.s32 %v433
    %v435 = vcvt.f32.s32 %v429
    %v436 = vshll.u32 %v435, 16
    %v437 = vadd.s32 %v436, %v434
    %vm438 = vcmp.eq.s32.totalorder %v397, %v437
    %v439 = vsel %vm438, %v395, %v416
    %v440 = vld [vmem:[%s6] sm:$0xf]
    %v441 = vld [vmem:[#allocation5] sm:$0xff]
    %v442 = vld [vmem:[#allocation5 + $0x8] sm:$0xff]
    %v443 = vld [vmem:[#allocation5 + $0x10] sm:$0xff]
    %v444 = vld [vmem:[#allocation5 + $0x18] sm:$0xff]
    %v445 = vld [vmem:[#allocation5 + $0x20] sm:$0xff]
    %v446 = vld [vmem:[#allocation5 + $0x28] sm:$0xff]
    %v447 = vld [vmem:[#allocation5 + $0x30] sm:$0xff]
    %v448 = vld [vmem:[#allocation5 + $0x38] sm:$0xff]
    %v449 = vld [vmem:[#allocation5 + $0x40] sm:$0xff]
    %v450 = vld [vmem:[#allocation5 + $0x48] sm:$0xff]
    %v451 = vld [vmem:[#allocation5 + $0x50] sm:$0xff]
    %v452 = vld [vmem:[#allocation5 + $0x58] sm:$0xff]
    %v453 = vld [vmem:[#allocation5 + $0x60] sm:$0xff]
    %v454 = vld [vmem:[#allocation5 + $0x68] sm:$0xff]
    %v455 = vld [vmem:[#allocation5 + $0x70] sm:$0xff]
    %v456 = vld [vmem:[#allocation5 + $0x78] sm:$0xff]
    %v457 = vlaneseq
    %v458 = vshrl.u32 %v457, 7
    %v459 = vsub.s32 0, %v458
    %v460 = vrot.slane %v440, %v459
    %461 = vmatprep.subr.mxu0 0.0
    %462 = vmatpush1.msra.mxu0 %v456
    %463 = vmatprep.subr.mxu0 0.0
    %464 = vmatpush1.msra.mxu0 %v455
    %465 = vmatprep.subr.mxu0 0.0
    %466 = vmatpush1.msra.mxu0 %v454
    %467 = vmatprep.subr.mxu0 0.0
    %468 = vmatpush1.msra.mxu0 %v453
    %469 = vmatprep.subr.mxu0 0.0
    %470 = vmatpush1.msra.mxu0 %v452
    %471 = vmatprep.subr.mxu0 0.0
    %472 = vmatpush1.msra.mxu0 %v451
    %473 = vmatprep.subr.mxu0 0.0
    %474 = vmatpush1.msra.mxu0 %v450
    %475 = vmatprep.subr.mxu0 0.0
    %476 = vmatpush1.msra.mxu0 %v449
    %477 = vmatprep.subr.mxu0 0.0
    %478 = vmatpush1.msra.mxu0 %v448
    %479 = vmatprep.subr.mxu0 0.0
    %480 = vmatpush1.msra.mxu0 %v447
    %481 = vmatprep.subr.mxu0 0.0
    %482 = vmatpush1.msra.mxu0 %v446
    %483 = vmatprep.subr.mxu0 0.0
    %484 = vmatpush1.msra.mxu0 %v445
    %485 = vmatprep.subr.mxu0 0.0
    %486 = vmatpush1.msra.mxu0 %v444
    %487 = vmatprep.subr.mxu0 0.0
    %488 = vmatpush1.msra.mxu0 %v443
    %489 = vmatprep.subr.mxu0 0.0
    %490 = vmatpush1.msra.mxu0 %v442
    %491 = vmatprep.subr.mxu0 0.0
    %492 = vmatpush1.msra.mxu0 %v441
    %493 = vmatprep.subr.mxu0 0.0
    %494 = vmatpush2.msra.mxu0 0.0
    %495 = vmatprep.subr.mxu0 0.0
    %496 = vmatpush2.msra.mxu0 0.0
    %497 = vmatprep.subr.mxu0 0.0
    %498 = vmatpush2.msra.mxu0 0.0
    %499 = vmatprep.subr.mxu0 0.0
    %500 = vmatpush2.msra.mxu0 0.0
    %501 = vmatprep.subr.mxu0 0.0
    %502 = vmatpush2.msra.mxu0 0.0
    %503 = vmatprep.subr.mxu0 0.0
    %504 = vmatpush2.msra.mxu0 0.0
    %505 = vmatprep.subr.mxu0 0.0
    %506 = vmatpush2.msra.mxu0 0.0
    %507 = vmatprep.subr.mxu0 0.0
    %508 = vmatpush2.msra.mxu0 0.0
    %509 = vmatprep.subr.mxu0 0.0
    %510 = vmatpush2.msra.mxu0 0.0
    %511 = vmatprep.subr.mxu0 0.0
    %512 = vmatpush2.msra.mxu0 0.0
    %513 = vmatprep.subr.mxu0 0.0
    %514 = vmatpush2.msra.mxu0 0.0
    %515 = vmatprep.subr.mxu0 0.0
    %516 = vmatpush2.msra.mxu0 0.0
    %517 = vmatprep.subr.mxu0 0.0
    %518 = vmatpush2.msra.mxu0 0.0
    %519 = vmatprep.subr.mxu0 0.0
    %520 = vmatpush2.msra.mxu0 0.0
    %521 = vmatprep.subr.mxu0 0.0
    %522 = vmatpush2.msra.mxu0 0.0
    %523 = vmatprep.subr.mxu0 0.0
    %524 = vmatpush2.msra.mxu0 0.0
    %525 = vmatprep.mubr.f32.mxu0 0.0
    %526 = vmatmul.mubr.f32.gmra.mxu0 %v284
    %v527 = vpop.f32.mrf.mxu0
    %v528 = vadd.f32 %v460, %v527
    %v529 = vpop.f32.mrf.mxu0
    %530 = vdwg.mxu0
    %532 = vset.pattern.permute.xlu0 0
    %533 = vperm.xlu0 %532, %v439
    %v534 = vpop.permute.xlu0 %533
    %v536 = vmul.f32 %v534, %v528
    %v537 = vadd.f32 %v536, 0.0
    %v538 = vld [vmem:[#allocation5 + $0x80] sm:$0xff]
    %v539 = vld [vmem:[#allocation5 + $0x88] sm:$0xff]
    %v540 = vld [vmem:[#allocation5 + $0x90] sm:$0xff]
    %v541 = vld [vmem:[#allocation5 + $0x98] sm:$0xff]
    %v542 = vld [vmem:[#allocation5 + $0xa0] sm:$0xff]
    %v543 = vld [vmem:[#allocation5 + $0xa8] sm:$0xff]
    %v544 = vld [vmem:[#allocation5 + $0xb0] sm:$0xff]
    %v545 = vld [vmem:[#allocation5 + $0xb8] sm:$0xff]
    %v546 = vld [vmem:[#allocation5 + $0xc0] sm:$0xff]
    %v547 = vld [vmem:[#allocation5 + $0xc8] sm:$0xff]
    %v548 = vld [vmem:[#allocation5 + $0xd0] sm:$0xff]
    %v549 = vld [vmem:[#allocation5 + $0xd8] sm:$0xff]
    %v550 = vld [vmem:[#allocation5 + $0xe0] sm:$0xff]
    %v551 = vld [vmem:[#allocation5 + $0xe8] sm:$0xff]
    %v552 = vld [vmem:[#allocation5 + $0xf0] sm:$0xff]
    %v553 = vld [vmem:[#allocation5 + $0xf8] sm:$0xff]
    %v554 = vlaneseq
    %v555 = vshrl.u32 %v554, 7
    %v556 = vsub.s32 1, %v555
    %v557 = vrot.slane %v440, %v556
    %558 = vmatprep.subr.mxu0 0.0
    %559 = vmatpush1.msra.mxu0 %v553
    %560 = vmatprep.subr.mxu0 0.0
    %561 = vmatpush1.msra.mxu0 %v552
    %562 = vmatprep.subr.mxu0 0.0
    %563 = vmatpush1.msra.mxu0 %v551
    %564 = vmatprep.subr.mxu0 0.0
    %565 = vmatpush1.msra.mxu0 %v550
    %566 = vmatprep.subr.mxu0 0.0
    %567 = vmatpush1.msra.mxu0 %v549
    %568 = vmatprep.subr.mxu0 0.0
    %569 = vmatpush1.msra.mxu0 %v548
    %570 = vmatprep.subr.mxu0 0.0
    %571 = vmatpush1.msra.mxu0 %v547
    %572 = vmatprep.subr.mxu0 0.0
    %573 = vmatpush1.msra.mxu0 %v546
    %574 = vmatprep.subr.mxu0 0.0
    %575 = vmatpush1.msra.mxu0 %v545
    %576 = vmatprep.subr.mxu0 0.0
    %577 = vmatpush1.msra.mxu0 %v544
    %578 = vmatprep.subr.mxu0 0.0
    %579 = vmatpush1.msra.mxu0 %v543
    %580 = vmatprep.subr.mxu0 0.0
    %581 = vmatpush1.msra.mxu0 %v542
    %582 = vmatprep.subr.mxu0 0.0
    %583 = vmatpush1.msra.mxu0 %v541
    %584 = vmatprep.subr.mxu0 0.0
    %585 = vmatpush1.msra.mxu0 %v540
    %586 = vmatprep.subr.mxu0 0.0
    %587 = vmatpush1.msra.mxu0 %v539
    %588 = vmatprep.subr.mxu0 0.0
    %589 = vmatpush1.msra.mxu0 %v538
    %590 = vmatprep.subr.mxu0 0.0
    %591 = vmatpush2.msra.mxu0 0.0
    %592 = vmatprep.subr.mxu0 0.0
    %593 = vmatpush2.msra.mxu0 0.0
    %594 = vmatprep.subr.mxu0 0.0
    %595 = vmatpush2.msra.mxu0 0.0
    %596 = vmatprep.subr.mxu0 0.0
    %597 = vmatpush2.msra.mxu0 0.0
    %598 = vmatprep.subr.mxu0 0.0
    %599 = vmatpush2.msra.mxu0 0.0
    %600 = vmatprep.subr.mxu0 0.0
    %601 = vmatpush2.msra.mxu0 0.0
    %602 = vmatprep.subr.mxu0 0.0
    %603 = vmatpush2.msra.mxu0 0.0
    %604 = vmatprep.subr.mxu0 0.0
    %605 = vmatpush2.msra.mxu0 0.0
    %606 = vmatprep.subr.mxu0 0.0
    %607 = vmatpush2.msra.mxu0 0.0
    %608 = vmatprep.subr.mxu0 0.0
    %609 = vmatpush2.msra.mxu0 0.0
    %610 = vmatprep.subr.mxu0 0.0
    %611 = vmatpush2.msra.mxu0 0.0
    %612 = vmatprep.subr.mxu0 0.0
    %613 = vmatpush2.msra.mxu0 0.0
    %614 = vmatprep.subr.mxu0 0.0
    %615 = vmatpush2.msra.mxu0 0.0
    %616 = vmatprep.subr.mxu0 0.0
    %617 = vmatpush2.msra.mxu0 0.0
    %618 = vmatprep.subr.mxu0 0.0
    %619 = vmatpush2.msra.mxu0 0.0
    %620 = vmatprep.subr.mxu0 0.0
    %621 = vmatpush2.msra.mxu0 0.0
    %622 = vmatprep.mubr.f32.mxu0 0.0
    %623 = vmatmul.mubr.f32.gmra.mxu0 %v285
    %v624 = vpop.f32.mrf.mxu0
    %v625 = vadd.f32 %v557, %v624
    %v626 = vpop.f32.mrf.mxu0
    %627 = vdwg.mxu0
    %628 = vset.pattern.permute.xlu0 1
    %629 = vperm.xlu0 %628, %v439
    %v630 = vpop.permute.xlu0 %629
    %v632 = vmul.f32 %v630, %v625
    %v633 = vadd.f32 %v537, %v632
    %v634 = vld [vmem:[#allocation5 + $0x100] sm:$0xff]
    %v635 = vld [vmem:[#allocation5 + $0x108] sm:$0xff]
    %v636 = vld [vmem:[#allocation5 + $0x110] sm:$0xff]
    %v637 = vld [vmem:[#allocation5 + $0x118] sm:$0xff]
    %v638 = vld [vmem:[#allocation5 + $0x120] sm:$0xff]
    %v639 = vld [vmem:[#allocation5 + $0x128] sm:$0xff]
    %v640 = vld [vmem:[#allocation5 + $0x130] sm:$0xff]
    %v641 = vld [vmem:[#allocation5 + $0x138] sm:$0xff]
    %v642 = vld [vmem:[#allocation5 + $0x140] sm:$0xff]
    %v643 = vld [vmem:[#allocation5 + $0x148] sm:$0xff]
    %v644 = vld [vmem:[#allocation5 + $0x150] sm:$0xff]
    %v645 = vld [vmem:[#allocation5 + $0x158] sm:$0xff]
    %v646 = vld [vmem:[#allocation5 + $0x160] sm:$0xff]
    %v647 = vld [vmem:[#allocation5 + $0x168] sm:$0xff]
    %v648 = vld [vmem:[#allocation5 + $0x170] sm:$0xff]
    %v649 = vld [vmem:[#allocation5 + $0x178] sm:$0xff]
    %v650 = vlaneseq
    %v651 = vshrl.u32 %v650, 7
    %v652 = vsub.s32 2, %v651
    %v653 = vrot.slane %v440, %v652
    %654 = vmatprep.subr.mxu0 0.0
    %655 = vmatpush1.msra.mxu0 %v649
    %656 = vmatprep.subr.mxu0 0.0
    %657 = vmatpush1.msra.mxu0 %v648
    %658 = vmatprep.subr.mxu0 0.0
    %659 = vmatpush1.msra.mxu0 %v647
    %660 = vmatprep.subr.mxu0 0.0
    %661 = vmatpush1.msra.mxu0 %v646
    %662 = vmatprep.subr.mxu0 0.0
    %663 = vmatpush1.msra.mxu0 %v645
    %664 = vmatprep.subr.mxu0 0.0
    %665 = vmatpush1.msra.mxu0 %v644
    %666 = vmatprep.subr.mxu0 0.0
    %667 = vmatpush1.msra.mxu0 %v643
    %668 = vmatprep.subr.mxu0 0.0
    %669 = vmatpush1.msra.mxu0 %v642
    %670 = vmatprep.subr.mxu0 0.0
    %671 = vmatpush1.msra.mxu0 %v641
    %672 = vmatprep.subr.mxu0 0.0
    %673 = vmatpush1.msra.mxu0 %v640
    %674 = vmatprep.subr.mxu0 0.0
    %675 = vmatpush1.msra.mxu0 %v639
    %676 = vmatprep.subr.mxu0 0.0
    %677 = vmatpush1.msra.mxu0 %v638
    %678 = vmatprep.subr.mxu0 0.0
    %679 = vmatpush1.msra.mxu0 %v637
    %680 = vmatprep.subr.mxu0 0.0
    %681 = vmatpush1.msra.mxu0 %v636
    %682 = vmatprep.subr.mxu0 0.0
    %683 = vmatpush1.msra.mxu0 %v635
    %684 = vmatprep.subr.mxu0 0.0
    %685 = vmatpush1.msra.mxu0 %v634
    %686 = vmatprep.subr.mxu0 0.0
    %687 = vmatpush2.msra.mxu0 0.0
    %688 = vmatprep.subr.mxu0 0.0
    %689 = vmatpush2.msra.mxu0 0.0
    %690 = vmatprep.subr.mxu0 0.0
    %691 = vmatpush2.msra.mxu0 0.0
    %692 = vmatprep.subr.mxu0 0.0
    %693 = vmatpush2.msra.mxu0 0.0
    %694 = vmatprep.subr.mxu0 0.0
    %695 = vmatpush2.msra.mxu0 0.0
    %696 = vmatprep.subr.mxu0 0.0
    %697 = vmatpush2.msra.mxu0 0.0
    %698 = vmatprep.subr.mxu0 0.0
    %699 = vmatpush2.msra.mxu0 0.0
    %700 = vmatprep.subr.mxu0 0.0
    %701 = vmatpush2.msra.mxu0 0.0
    %702 = vmatprep.subr.mxu0 0.0
    %703 = vmatpush2.msra.mxu0 0.0
    %704 = vmatprep.subr.mxu0 0.0
    %705 = vmatpush2.msra.mxu0 0.0
    %706 = vmatprep.subr.mxu0 0.0
    %707 = vmatpush2.msra.mxu0 0.0
    %708 = vmatprep.subr.mxu0 0.0
    %709 = vmatpush2.msra.mxu0 0.0
    %710 = vmatprep.subr.mxu0 0.0
    %711 = vmatpush2.msra.mxu0 0.0
    %712 = vmatprep.subr.mxu0 0.0
    %713 = vmatpush2.msra.mxu0 0.0
    %714 = vmatprep.subr.mxu0 0.0
    %715 = vmatpush2.msra.mxu0 0.0
    %716 = vmatprep.subr.mxu0 0.0
    %717 = vmatpush2.msra.mxu0 0.0
    %718 = vmatprep.mubr.f32.mxu0 0.0
    %719 = vmatmul.mubr.f32.gmra.mxu0 %v286
    %v720 = vpop.f32.mrf.mxu0
    %v721 = vadd.f32 %v653, %v720
    %v722 = vpop.f32.mrf.mxu0
    %723 = vdwg.mxu0
    %724 = vset.pattern.permute.xlu0 2
    %725 = vperm.xlu0 %724, %v439
    %v726 = vpop.permute.xlu0 %725
    %v728 = vmul.f32 %v726, %v721
    %v729 = vadd.f32 %v633, %v728
    %v730 = vld [vmem:[#allocation5 + $0x180] sm:$0xff]
    %v731 = vld [vmem:[#allocation5 + $0x188] sm:$0xff]
    %v732 = vld [vmem:[#allocation5 + $0x190] sm:$0xff]
    %v733 = vld [vmem:[#allocation5 + $0x198] sm:$0xff]
    %v734 = vld [vmem:[#allocation5 + $0x1a0] sm:$0xff]
    %v735 = vld [vmem:[#allocation5 + $0x1a8] sm:$0xff]
    %v736 = vld [vmem:[#allocation5 + $0x1b0] sm:$0xff]
    %v737 = vld [vmem:[#allocation5 + $0x1b8] sm:$0xff]
    %v738 = vld [vmem:[#allocation5 + $0x1c0] sm:$0xff]
    %v739 = vld [vmem:[#allocation5 + $0x1c8] sm:$0xff]
    %v740 = vld [vmem:[#allocation5 + $0x1d0] sm:$0xff]
    %v741 = vld [vmem:[#allocation5 + $0x1d8] sm:$0xff]
    %v742 = vld [vmem:[#allocation5 + $0x1e0] sm:$0xff]
    %v743 = vld [vmem:[#allocation5 + $0x1e8] sm:$0xff]
    %v744 = vld [vmem:[#allocation5 + $0x1f0] sm:$0xff]
    %v745 = vld [vmem:[#allocation5 + $0x1f8] sm:$0xff]
    %v746 = vlaneseq
    %v747 = vshrl.u32 %v746, 7
    %v748 = vsub.s32 3, %v747
    %v749 = vrot.slane %v440, %v748
    %750 = vmatprep.subr.mxu0 0.0
    %751 = vmatpush1.msra.mxu0 %v745
    %752 = vmatprep.subr.mxu0 0.0
    %753 = vmatpush1.msra.mxu0 %v744
    %754 = vmatprep.subr.mxu0 0.0
    %755 = vmatpush1.msra.mxu0 %v743
    %756 = vmatprep.subr.mxu0 0.0
    %757 = vmatpush1.msra.mxu0 %v742
    %758 = vmatprep.subr.mxu0 0.0
    %759 = vmatpush1.msra.mxu0 %v741
    %760 = vmatprep.subr.mxu0 0.0
    %761 = vmatpush1.msra.mxu0 %v740
    %762 = vmatprep.subr.mxu0 0.0
    %763 = vmatpush1.msra.mxu0 %v739
    %764 = vmatprep.subr.mxu0 0.0
    %765 = vmatpush1.msra.mxu0 %v738
    %766 = vmatprep.subr.mxu0 0.0
    %767 = vmatpush1.msra.mxu0 %v737
    %768 = vmatprep.subr.mxu0 0.0
    %769 = vmatpush1.msra.mxu0 %v736
    %770 = vmatprep.subr.mxu0 0.0
    %771 = vmatpush1.msra.mxu0 %v735
    %772 = vmatprep.subr.mxu0 0.0
    %773 = vmatpush1.msra.mxu0 %v734
    %774 = vmatprep.subr.mxu0 0.0
    %775 = vmatpush1.msra.mxu0 %v733
    %776 = vmatprep.subr.mxu0 0.0
    %777 = vmatpush1.msra.mxu0 %v732
    %778 = vmatprep.subr.mxu0 0.0
    %779 = vmatpush1.msra.mxu0 %v731
    %780 = vmatprep.subr.mxu0 0.0
    %781 = vmatpush1.msra.mxu0 %v730
    %782 = vmatprep.subr.mxu0 0.0
    %783 = vmatpush2.msra.mxu0 0.0
    %784 = vmatprep.subr.mxu0 0.0
    %785 = vmatpush2.msra.mxu0 0.0
    %786 = vmatprep.subr.mxu0 0.0
    %787 = vmatpush2.msra.mxu0 0.0
    %788 = vmatprep.subr.mxu0 0.0
    %789 = vmatpush2.msra.mxu0 0.0
    %790 = vmatprep.subr.mxu0 0.0
    %791 = vmatpush2.msra.mxu0 0.0
    %792 = vmatprep.subr.mxu0 0.0
    %793 = vmatpush2.msra.mxu0 0.0
    %794 = vmatprep.subr.mxu0 0.0
    %795 = vmatpush2.msra.mxu0 0.0
    %796 = vmatprep.subr.mxu0 0.0
    %797 = vmatpush2.msra.mxu0 0.0
    %798 = vmatprep.subr.mxu0 0.0
    %799 = vmatpush2.msra.mxu0 0.0
    %800 = vmatprep.subr.mxu0 0.0
    %801 = vmatpush2.msra.mxu0 0.0
    %802 = vmatprep.subr.mxu0 0.0
    %803 = vmatpush2.msra.mxu0 0.0
    %804 = vmatprep.subr.mxu0 0.0
    %805 = vmatpush2.msra.mxu0 0.0
    %806 = vmatprep.subr.mxu0 0.0
    %807 = vmatpush2.msra.mxu0 0.0
    %808 = vmatprep.subr.mxu0 0.0
    %809 = vmatpush2.msra.mxu0 0.0
    %810 = vmatprep.subr.mxu0 0.0
    %811 = vmatpush2.msra.mxu0 0.0
    %812 = vmatprep.subr.mxu0 0.0
    %813 = vmatpush2.msra.mxu0 0.0
    %814 = vmatprep.mubr.f32.mxu0 0.0
    %815 = vmatmul.mubr.f32.gmra.mxu0 %v287
    %v816 = vpop.f32.mrf.mxu0
    %v817 = vadd.f32 %v749, %v816
    %v818 = vpop.f32.mrf.mxu0
    %819 = vdwg.mxu0
    %820 = vset.pattern.permute.xlu0 3
    %821 = vperm.xlu0 %820, %v439
    %v822 = vpop.permute.xlu0 %821
    %v824 = vmul.f32 %v822, %v817
    %v825 = vadd.f32 %v729, %v824
    %826 = vst [vmem:[#allocation7] sm:$0xff] %v825
    // Predicated region
    $region38: #{sparse_moe.1} parent=1 // pred_check
      _
    $region39: #{sparse_moe.1} parent=1 // pred_check_branch
      %828 = sbr.rel (0) target = $region41
    $region40: #{sparse_moe.1} parent=1 // pred_region
      %s830 = ssub.s32 128, 128
      %831 = vsyncadd [#allocation4], %s830
      %s833 = sshll.u32 [#allocation7], 4
      %s834 = int_to_ptr.vmem [resolvable:$true] %s833
      %836 = dma.vmem_to_hbm [thread:$0]  %s834, 128, %s7, [#allocation4]
    $region41: #{sparse_moe.1} parent=1 // pred_fallthru
      _
    // Predicated region
    $region42: #{sparse_moe.1} parent=1 // pred_check
      _
    $region43: #{sparse_moe.1} parent=1 // pred_check_branch
      %838 = sbr.rel (0) target = $region45
    $region44: #{sparse_moe.1} parent=1 // pred_region
      %839 = dma.done [#allocation4], 128
    $region45: #{sparse_moe.1} parent=1 // pred_fallthru
      _
    %840 = vsyncpa [#allocation3], 1
    %841 = vsyncpa [#allocation6], 1
    %842 = vsyncpa [#allocation4], 1

</llo_original>
